<compile_context>
chip_gen: v7x
topology: tpu7x:2x2x1
jax: 0.10.0
libtpu: 0.0.40
codegen_flags: <defaults>
</compile_context>

<pallas_src>
import jax
import jax.numpy as jnp
from jax.experimental import pallas as pl
from jax.experimental.pallas import tpu as pltpu

HIDDEN_DIM = 32      # args.nhid
ENC_INTER = 64       # encoder MLP intermediate_dim
DEC_INTER = 64       # decoder MLP intermediate_dim
_IN_ROWS = 8         # packed input slab rows: [xp, xc, op0, op1, op2, 0, 0, 0]
_LANE = 128
_MAX_TILE = 8192     # lane-tile cap; per-step footprint ~12 MB max, fits scoped VMEM


def _round_up(x, m):
    return ((x + m - 1) // m) * m


def _arithmetic_kernel(xin_ref,
                       w_enc_ref, b_prev_ref, b_cur_ref,
                       w_mid_prev_ref, w_mid_cur_ref,
                       a_op0_ref, a_op1_ref, a_op2_ref,
                       b_mid_ref, w_out_ref, b_out_ref,
                       out_ref):
    # Feature-major layout: features on sublanes, batch on lanes.
    xin = xin_ref[...]                                  # [8, TB] f32 (single DMA slab)
    xp, xc = xin[0:1, :], xin[1:2, :]                   # [1, TB] each
    op0, op1, op2 = xin[2:3, :], xin[3:4, :], xin[4:5, :]

    w_enc = w_enc_ref[...]                              # [64, 1]

    # Encoder layer 1 (VPU, f32). The cat([x, 0/1]) flag column is folded into biases.
    h_prev = jnp.maximum(w_enc * xp + b_prev_ref[...], 0.0)     # [64, TB]
    h_cur = jnp.maximum(w_enc * xc + b_cur_ref[...], 0.0)       # [64, TB]

    # Mid network (encoder L2 folded into decoder L1): two accumulated K=64 bf16
    # MXU dots with f32 accumulation -- no concat, no padded-K pass.
    hd_pre = jnp.dot(w_mid_prev_ref[...], h_prev.astype(jnp.bfloat16),
                     preferred_element_type=jnp.float32)
    hd_pre = hd_pre + jnp.dot(w_mid_cur_ref[...], h_cur.astype(jnp.bfloat16),
                              preferred_element_type=jnp.float32)

    # Operation contribution: 3 VPU broadcast multiply-adds (kept off the MXU).
    op_term = (a_op0_ref[...] * op0 + a_op1_ref[...] * op1 + a_op2_ref[...] * op2)

    hd = jnp.maximum(hd_pre + op_term + b_mid_ref[...], 0.0)    # [64, TB]

    # Decoder layer 2 (M=1): VPU broadcast-mul + sublane (XLU) reduce, not a 1x64 MXU op.
    out_ref[...] = (jnp.sum(hd * w_out_ref[...], axis=0, keepdims=True)
                    + b_out_ref[...])                            # [1, TB] lane-dense


def fold_params(p):
    """One-time parameter folding + feature-major layout.

    Call ONCE and reuse the result for every arithmetic_model() call (hoisted out of
    the hot path per the performance review)."""
    h = HIDDEN_DIM
    dec_w1 = p["dec_w1"]                                        # [2H+3, 64]
    a_prev = p["enc_w2"] @ dec_w1[:h]                           # [64, 64]
    a_cur = p["enc_w2"] @ dec_w1[h:2 * h]                       # [64, 64]
    a_op = dec_w1[2 * h:]                                       # [3, 64]
    b_mid = (p["dec_b1"] + p["enc_b2"] @ (dec_w1[:h] + dec_w1[h:2 * h])).T  # [64, 1]
    return dict(
        w_enc=p["enc_w1"][0:1, :].T,                            # [64, 1]
        b_prev=p["enc_b1"].T,                                   # [64, 1]
        b_cur=(p["enc_b1"] + p["enc_w1"][1:2, :]).T,            # [64, 1]
        w_mid_prev=a_prev.T.astype(jnp.bfloat16),               # [64, 64] bf16 (MXU)
        w_mid_cur=a_cur.T.astype(jnp.bfloat16),                 # [64, 64] bf16 (MXU)
        a_op0=a_op[0:1].T,                                      # [64, 1]
        a_op1=a_op[1:2].T,                                      # [64, 1]
        a_op2=a_op[2:3].T,                                      # [64, 1]
        b_mid=b_mid,                                            # [64, 1]
        w_out=p["dec_w2"],                                      # [64, 1]
        b_out=p["dec_b2"],                                      # [1, 1]
    )


def _choose_tile(b):
    b128 = _round_up(max(b, 1), _LANE)
    if b128 <= _LANE:
        return _LANE
    # >= 2 grid steps so the "parallel" axis feeds both v7x TensorCores; cap the
    # lane tile so per-step VMEM stays small on every generation.
    return min(_MAX_TILE, _round_up((b128 + 1) // 2, _LANE))


_WEIGHT_ORDER = ("w_enc", "b_prev", "b_cur", "w_mid_prev", "w_mid_cur",
                 "a_op0", "a_op1", "a_op2", "b_mid", "w_out", "b_out")


@jax.jit
def arithmetic_model(x_prev, x_cur, operation, folded):
    """Pallas ArithmeticModel.forward (num_rules == 0). `folded` = fold_params(params)."""
    b = x_prev.shape[0]
    tb = _choose_tile(b)
    b_pad = _round_up(b, tb)

    # Single packed feature-major input slab: rows [xp, xc, op0, op1, op2, 0, 0, 0].
    feat = jnp.concatenate(
        [x_prev, x_cur, operation,
         jnp.zeros((b, _IN_ROWS - 2 - operation.shape[1]), jnp.float32)], axis=1)
    xin = jnp.pad(feat, ((0, b_pad - b), (0, 0))).T              # [8, Bp]

    weights = tuple(folded[k] for k in _WEIGHT_ORDER)

    in_specs = ([pl.BlockSpec((_IN_ROWS, tb), lambda i: (0, i))]
                + [pl.BlockSpec(w.shape, lambda i: (0, 0)) for w in weights])

    flops = b_pad * (4 * DEC_INTER * ENC_INTER + 14 * ENC_INTER)
    bytes_accessed = (int(xin.size) * 4
                      + sum(int(w.size) * w.dtype.itemsize for w in weights)
                      + b_pad * 4)
    cost = pl.CostEstimate(flops=flops, transcendentals=0,
                           bytes_accessed=bytes_accessed)

    out = pl.pallas_call(
        _arithmetic_kernel,
        out_shape=jax.ShapeDtypeStruct((1, b_pad), jnp.float32),
        grid=(b_pad // tb,),
        in_specs=in_specs,
        out_specs=pl.BlockSpec((1, tb), lambda i: (0, i)),
        compiler_params=pltpu.CompilerParams(dimension_semantics=("parallel",)),
        cost_estimate=cost,
    )(xin, *weights)
    return out[:, :b].reshape(b, 1)


def init_params(key, hidden=HIDDEN_DIM):
    """Deterministic PyTorch-Linear-style (uniform +-1/sqrt(fan_in)) init."""
    def linear(k, fan_in, fan_out):
        k1, k2 = jax.random.split(k)
        bound = 1.0 / float(fan_in) ** 0.5
        w = jax.random.uniform(k1, (fan_in, fan_out), jnp.float32, -bound, bound)
        b = jax.random.uniform(k2, (1, fan_out), jnp.float32, -bound, bound)
        return w, b

    ks = jax.random.split(key, 6)
    enc_w1, enc_b1 = linear(ks[0], 2, ENC_INTER)
    enc_w2, enc_b2 = linear(ks[1], ENC_INTER, hidden)
    op_w1, op_b1 = linear(ks[2], 3, ENC_INTER)          # dead in forward, kept for fidelity
    op_w2, op_b2 = linear(ks[3], ENC_INTER, hidden)
    dec_w1, dec_b1 = linear(ks[4], 2 * hidden + 3, DEC_INTER)
    dec_w2, dec_b2 = linear(ks[5], DEC_INTER, 1)
    return dict(
        enc_w1=enc_w1, enc_b1=enc_b1, enc_w2=enc_w2, enc_b2=enc_b2,
        op_w1=op_w1, op_b1=op_b1, op_w2=op_w2, op_b2=op_b2,
        dec_w1=dec_w1, dec_b1=dec_b1, dec_w2=dec_w2, dec_b2=dec_b2,
    )


def reference_model(x_prev, x_cur, operation, p):
    """Pure-JAX reference mirroring the PyTorch forward (num_rules == 0)."""
    def mlp(x, w1, b1, w2, b2):
        return jnp.maximum(x @ w1 + b1, 0.0) @ w2 + b2

    b = x_prev.shape[0]
    xp = jnp.concatenate([x_prev, jnp.zeros((b, 1), jnp.float32)], axis=1)
    xc = jnp.concatenate([x_cur, jnp.ones((b, 1), jnp.float32)], axis=1)
    e_prev = mlp(xp, p["enc_w1"], p["enc_b1"], p["enc_w2"], p["enc_b2"])
    e_cur = mlp(xc, p["enc_w1"], p["enc_b1"], p["enc_w2"], p["enc_b2"])
    _ = mlp(operation, p["op_w1"], p["op_b1"], p["op_w2"], p["op_b2"])  # dead (unused)
    inter = jnp.concatenate([e_prev, e_cur, operation], axis=1)
    return mlp(inter, p["dec_w1"], p["dec_b1"], p["dec_w2"], p["dec_b2"])


# TODO(synk): RuleNetwork (num_rules > 0 branch) is not defined in the reference
# source, so only the num_rules == 0 path is implemented.

if __name__ == "__main__":
    key = jax.random.PRNGKey(0)
    k_p, k1, k2, k3 = jax.random.split(key, 4)

    batch = 8
    params = init_params(k_p)
    folded = fold_params(params)          # one-time parameter folding (hoisted)

    x_prev = jax.random.normal(k1, (batch, 1), jnp.float32)
    x_cur = jax.random.normal(k2, (batch, 1), jnp.float32)
    # one-hot operation selector over {add, sub, mul}, like the arithmetic task.
    op_idx = jax.random.randint(k3, (batch,), 0, 3)
    operation = jax.nn.one_hot(op_idx, 3, dtype=jnp.float32)

    out = jax.block_until_ready(arithmetic_model(x_prev, x_cur, operation, folded))
    ref = jax.block_until_ready(reference_model(x_prev, x_cur, operation, params))

    assert out.shape == (batch, 1), out.shape
    # Tolerance loosened for the bf16-MXU mid matmul (f32 accumulation).
    assert jnp.allclose(out, ref, atol=1e-2, rtol=1e-2), (out, ref)
    print("KERNEL_OK")
</pallas_src>

<mosaic_0001>
module attributes {stable_mosaic.version = 11 : i64} {
  func.func @_arithmetic_kernel(%arg0: i32, %arg1: memref<8x128xf32, #tpu.memory_space<vmem>>, %arg2: memref<64x1xf32, #tpu.memory_space<vmem>>, %arg3: memref<64x1xf32, #tpu.memory_space<vmem>>, %arg4: memref<64x1xf32, #tpu.memory_space<vmem>>, %arg5: memref<64x64xbf16, #tpu.memory_space<vmem>>, %arg6: memref<64x64xbf16, #tpu.memory_space<vmem>>, %arg7: memref<64x1xf32, #tpu.memory_space<vmem>>, %arg8: memref<64x1xf32, #tpu.memory_space<vmem>>, %arg9: memref<64x1xf32, #tpu.memory_space<vmem>>, %arg10: memref<64x1xf32, #tpu.memory_space<vmem>>, %arg11: memref<64x1xf32, #tpu.memory_space<vmem>>, %arg12: memref<1x1xf32, #tpu.memory_space<vmem>>, %arg13: memref<1x128xf32, #tpu.memory_space<vmem>>) attributes {dimension_semantics = [#tpu.dimension_semantics<parallel>], iteration_bounds = array<i64: 1>, scalar_prefetch = 0 : i64, scratch_operands = 0 : i64, tpu.core_type = #tpu.core_type<tc>, window_params = [{transform_indices = @transform_0, window_bounds = array<i64: 8, 128>}, {pipeline_mode = #tpu.pipeline_mode<synchronous>, transform_indices = @transform_1, window_bounds = array<i64: 64, 1>}, {pipeline_mode = #tpu.pipeline_mode<synchronous>, transform_indices = @transform_2, window_bounds = array<i64: 64, 1>}, {pipeline_mode = #tpu.pipeline_mode<synchronous>, transform_indices = @transform_3, window_bounds = array<i64: 64, 1>}, {pipeline_mode = #tpu.pipeline_mode<synchronous>, transform_indices = @transform_4, window_bounds = array<i64: 64, 64>}, {pipeline_mode = #tpu.pipeline_mode<synchronous>, transform_indices = @transform_5, window_bounds = array<i64: 64, 64>}, {pipeline_mode = #tpu.pipeline_mode<synchronous>, transform_indices = @transform_6, window_bounds = array<i64: 64, 1>}, {pipeline_mode = #tpu.pipeline_mode<synchronous>, transform_indices = @transform_7, window_bounds = array<i64: 64, 1>}, {pipeline_mode = #tpu.pipeline_mode<synchronous>, transform_indices = @transform_8, window_bounds = array<i64: 64, 1>}, {pipeline_mode = #tpu.pipeline_mode<synchronous>, transform_indices = @transform_9, window_bounds = array<i64: 64, 1>}, {pipeline_mode = #tpu.pipeline_mode<synchronous>, transform_indices = @transform_10, window_bounds = array<i64: 64, 1>}, {pipeline_mode = #tpu.pipeline_mode<synchronous>, transform_indices = @transform_11, window_bounds = array<i64: 1, 1>}, {transform_indices = @transform_12, window_bounds = array<i64: 1, 128>}]} {
    %c0 = arith.constant 0 : index
    %c0_0 = arith.constant 0 : index
    %0 = vector.load %arg1[%c0, %c0_0] : memref<8x128xf32, #tpu.memory_space<vmem>>, vector<8x128xf32>
    %1 = vector.extract_strided_slice %0 {offsets = [0, 0], sizes = [1, 128], strides = [1, 1]} : vector<8x128xf32> to vector<1x128xf32>
    %2 = vector.extract_strided_slice %0 {offsets = [1, 0], sizes = [1, 128], strides = [1, 1]} : vector<8x128xf32> to vector<1x128xf32>
    %3 = vector.extract_strided_slice %0 {offsets = [2, 0], sizes = [1, 128], strides = [1, 1]} : vector<8x128xf32> to vector<1x128xf32>
    %4 = vector.extract_strided_slice %0 {offsets = [3, 0], sizes = [1, 128], strides = [1, 1]} : vector<8x128xf32> to vector<1x128xf32>
    %5 = vector.extract_strided_slice %0 {offsets = [4, 0], sizes = [1, 128], strides = [1, 1]} : vector<8x128xf32> to vector<1x128xf32>
    %c0_1 = arith.constant 0 : index
    %c0_2 = arith.constant 0 : index
    %6 = vector.load %arg2[%c0_1, %c0_2] : memref<64x1xf32, #tpu.memory_space<vmem>>, vector<64x1xf32>
    %7 = vector.broadcast %6 : vector<64x1xf32> to vector<64x128xf32>
    %8 = vector.broadcast %1 : vector<1x128xf32> to vector<64x128xf32>
    %9 = arith.mulf %7, %8 : vector<64x128xf32>
    %c0_3 = arith.constant 0 : index
    %c0_4 = arith.constant 0 : index
    %10 = vector.load %arg3[%c0_3, %c0_4] : memref<64x1xf32, #tpu.memory_space<vmem>>, vector<64x1xf32>
    %11 = vector.broadcast %10 : vector<64x1xf32> to vector<64x128xf32>
    %12 = arith.addf %9, %11 : vector<64x128xf32>
    %cst = arith.constant 0.000000e+00 : f32
    %13 = vector.broadcast %cst : f32 to vector<64x128xf32>
    %14 = arith.maximumf %12, %13 : vector<64x128xf32>
    %15 = vector.broadcast %6 : vector<64x1xf32> to vector<64x128xf32>
    %16 = vector.broadcast %2 : vector<1x128xf32> to vector<64x128xf32>
    %17 = arith.mulf %15, %16 : vector<64x128xf32>
    %c0_5 = arith.constant 0 : index
    %c0_6 = arith.constant 0 : index
    %18 = vector.load %arg4[%c0_5, %c0_6] : memref<64x1xf32, #tpu.memory_space<vmem>>, vector<64x1xf32>
    %19 = vector.broadcast %18 : vector<64x1xf32> to vector<64x128xf32>
    %20 = arith.addf %17, %19 : vector<64x128xf32>
    %cst_7 = arith.constant 0.000000e+00 : f32
    %21 = vector.broadcast %cst_7 : f32 to vector<64x128xf32>
    %22 = arith.maximumf %20, %21 : vector<64x128xf32>
    %c0_8 = arith.constant 0 : index
    %c0_9 = arith.constant 0 : index
    %23 = vector.load %arg5[%c0_8, %c0_9] : memref<64x64xbf16, #tpu.memory_space<vmem>>, vector<64x64xbf16>
    %24 = arith.truncf %14 : vector<64x128xf32> to vector<64x128xbf16>
    %cst_10 = arith.constant dense<0.000000e+00> : vector<64x128xf32>
    %25 = tpu.matmul %23, %24, %cst_10 {dimension_numbers = #tpu.dot_dimension_numbers<[1], [0], [0], [1], [0, 0, 1, 1], [], []>} : vector<64x64xbf16>, vector<64x128xbf16>, vector<64x128xf32> -> vector<64x128xf32>
    %c0_11 = arith.constant 0 : index
    %c0_12 = arith.constant 0 : index
    %26 = vector.load %arg6[%c0_11, %c0_12] : memref<64x64xbf16, #tpu.memory_space<vmem>>, vector<64x64xbf16>
    %27 = arith.truncf %22 : vector<64x128xf32> to vector<64x128xbf16>
    %cst_13 = arith.constant dense<0.000000e+00> : vector<64x128xf32>
    %28 = tpu.matmul %26, %27, %cst_13 {dimension_numbers = #tpu.dot_dimension_numbers<[1], [0], [0], [1], [0, 0, 1, 1], [], []>} : vector<64x64xbf16>, vector<64x128xbf16>, vector<64x128xf32> -> vector<64x128xf32>
    %29 = arith.addf %25, %28 : vector<64x128xf32>
    %c0_14 = arith.constant 0 : index
    %c0_15 = arith.constant 0 : index
    %30 = vector.load %arg7[%c0_14, %c0_15] : memref<64x1xf32, #tpu.memory_space<vmem>>, vector<64x1xf32>
    %31 = vector.broadcast %30 : vector<64x1xf32> to vector<64x128xf32>
    %32 = vector.broadcast %3 : vector<1x128xf32> to vector<64x128xf32>
    %33 = arith.mulf %31, %32 : vector<64x128xf32>
    %c0_16 = arith.constant 0 : index
    %c0_17 = arith.constant 0 : index
    %34 = vector.load %arg8[%c0_16, %c0_17] : memref<64x1xf32, #tpu.memory_space<vmem>>, vector<64x1xf32>
    %35 = vector.broadcast %34 : vector<64x1xf32> to vector<64x128xf32>
    %36 = vector.broadcast %4 : vector<1x128xf32> to vector<64x128xf32>
    %37 = arith.mulf %35, %36 : vector<64x128xf32>
    %38 = arith.addf %33, %37 : vector<64x128xf32>
    %c0_18 = arith.constant 0 : index
    %c0_19 = arith.constant 0 : index
    %39 = vector.load %arg9[%c0_18, %c0_19] : memref<64x1xf32, #tpu.memory_space<vmem>>, vector<64x1xf32>
    %40 = vector.broadcast %39 : vector<64x1xf32> to vector<64x128xf32>
    %41 = vector.broadcast %5 : vector<1x128xf32> to vector<64x128xf32>
    %42 = arith.mulf %40, %41 : vector<64x128xf32>
    %43 = arith.addf %38, %42 : vector<64x128xf32>
    %44 = arith.addf %29, %43 : vector<64x128xf32>
    %c0_20 = arith.constant 0 : index
    %c0_21 = arith.constant 0 : index
    %45 = vector.load %arg10[%c0_20, %c0_21] : memref<64x1xf32, #tpu.memory_space<vmem>>, vector<64x1xf32>
    %46 = vector.broadcast %45 : vector<64x1xf32> to vector<64x128xf32>
    %47 = arith.addf %44, %46 : vector<64x128xf32>
    %cst_22 = arith.constant 0.000000e+00 : f32
    %48 = vector.broadcast %cst_22 : f32 to vector<64x128xf32>
    %49 = arith.maximumf %47, %48 : vector<64x128xf32>
    %c0_23 = arith.constant 0 : index
    %c0_24 = arith.constant 0 : index
    %50 = vector.load %arg11[%c0_23, %c0_24] : memref<64x1xf32, #tpu.memory_space<vmem>>, vector<64x1xf32>
    %51 = vector.broadcast %50 : vector<64x1xf32> to vector<64x128xf32>
    %52 = arith.mulf %49, %51 : vector<64x128xf32>
    %cst_25 = arith.constant dense<0.000000e+00> : vector<128xf32>
    %53 = vector.multi_reduction <add>, %52, %cst_25 [0] : vector<64x128xf32> to vector<128xf32>
    %54 = vector.shape_cast %53 : vector<128xf32> to vector<1x128xf32>
    %c0_26 = arith.constant 0 : index
    %c0_27 = arith.constant 0 : index
    %55 = vector.load %arg12[%c0_26, %c0_27] : memref<1x1xf32, #tpu.memory_space<vmem>>, vector<1x1xf32>
    %56 = vector.broadcast %55 : vector<1x1xf32> to vector<1x128xf32>
    %57 = arith.addf %54, %56 : vector<1x128xf32>
    %c0_28 = arith.constant 0 : index
    %c0_29 = arith.constant 0 : index
    %58 = vector.load %arg13[%c0_28, %c0_29] : memref<1x128xf32, #tpu.memory_space<vmem>>, vector<1x128xf32>
    tpu.vector_store %arg13[%c0_28, %c0_29], %57 {strides = array<i32>} : memref<1x128xf32, #tpu.memory_space<vmem>>, vector<1x128xf32>,
    return
  }
  func.func @transform_0(%arg0: i32) -> (i32, i32) {
    %c0_i32 = arith.constant 0 : i32
    %c0_i32_0 = arith.constant 0 : i32
    return %c0_i32, %arg0 : i32, i32
  }
  func.func @transform_1(%arg0: i32) -> (i32, i32) {
    %c0_i32 = arith.constant 0 : i32
    %c0_i32_0 = arith.constant 0 : i32
    %c0_i32_1 = arith.constant 0 : i32
    return %c0_i32, %c0_i32_0 : i32, i32
  }
  func.func @transform_2(%arg0: i32) -> (i32, i32) {
    %c0_i32 = arith.constant 0 : i32
    %c0_i32_0 = arith.constant 0 : i32
    %c0_i32_1 = arith.constant 0 : i32
    return %c0_i32, %c0_i32_0 : i32, i32
  }
  func.func @transform_3(%arg0: i32) -> (i32, i32) {
    %c0_i32 = arith.constant 0 : i32
    %c0_i32_0 = arith.constant 0 : i32
    %c0_i32_1 = arith.constant 0 : i32
    return %c0_i32, %c0_i32_0 : i32, i32
  }
  func.func @transform_4(%arg0: i32) -> (i32, i32) {
    %c0_i32 = arith.constant 0 : i32
    %c0_i32_0 = arith.constant 0 : i32
    %c0_i32_1 = arith.constant 0 : i32
    return %c0_i32, %c0_i32_0 : i32, i32
  }
  func.func @transform_5(%arg0: i32) -> (i32, i32) {
    %c0_i32 = arith.constant 0 : i32
    %c0_i32_0 = arith.constant 0 : i32
    %c0_i32_1 = arith.constant 0 : i32
    return %c0_i32, %c0_i32_0 : i32, i32
  }
  func.func @transform_6(%arg0: i32) -> (i32, i32) {
    %c0_i32 = arith.constant 0 : i32
    %c0_i32_0 = arith.constant 0 : i32
    %c0_i32_1 = arith.constant 0 : i32
    return %c0_i32, %c0_i32_0 : i32, i32
  }
  func.func @transform_7(%arg0: i32) -> (i32, i32) {
    %c0_i32 = arith.constant 0 : i32
    %c0_i32_0 = arith.constant 0 : i32
    %c0_i32_1 = arith.constant 0 : i32
    return %c0_i32, %c0_i32_0 : i32, i32
  }
  func.func @transform_8(%arg0: i32) -> (i32, i32) {
    %c0_i32 = arith.constant 0 : i32
    %c0_i32_0 = arith.constant 0 : i32
    %c0_i32_1 = arith.constant 0 : i32
    return %c0_i32, %c0_i32_0 : i32, i32
  }
  func.func @transform_9(%arg0: i32) -> (i32, i32) {
    %c0_i32 = arith.constant 0 : i32
    %c0_i32_0 = arith.constant 0 : i32
    %c0_i32_1 = arith.constant 0 : i32
    return %c0_i32, %c0_i32_0 : i32, i32
  }
  func.func @transform_10(%arg0: i32) -> (i32, i32) {
    %c0_i32 = arith.constant 0 : i32
    %c0_i32_0 = arith.constant 0 : i32
    %c0_i32_1 = arith.constant 0 : i32
    return %c0_i32, %c0_i32_0 : i32, i32
  }
  func.func @transform_11(%arg0: i32) -> (i32, i32) {
    %c0_i32 = arith.constant 0 : i32
    %c0_i32_0 = arith.constant 0 : i32
    %c0_i32_1 = arith.constant 0 : i32
    return %c0_i32, %c0_i32_0 : i32, i32
  }
  func.func @transform_12(%arg0: i32) -> (i32, i32) {
    %c0_i32 = arith.constant 0 : i32
    %c0_i32_0 = arith.constant 0 : i32
    return %c0_i32, %arg0 : i32, i32
  }
}

</mosaic_0001>

<llo_original>
// kernel: arithmetic_model.1
$region0: #{arithmetic_model.1}
  #allocation0 [shape = 'u32[]', space=smem, size = 0x4, offset = 0x4, fixed_abs, tag = 'smem constant byte address 0x4 - core index']
  #allocation1 [shape = 'u32[144,128]{1,0:T(1,128)}', space=vmem, size = 0x12000, scoped, tag = 'internal scratch']
  #allocation2 [shape = 'f32[1,1]{1,0:T(1,128)S(1)}', space=vmem, size = 0x200, scoped, tag = 'scoped memory for arithmetic_model.1']
  %s0 = inlined_call_operand.vmem [shape: f32[8,128], index: 0, kind: input, shape index: {}]
  %s1 = inlined_call_operand.vmem [shape: f32[64,1], index: 1, kind: input, shape index: {}]
  %s2 = inlined_call_operand.vmem [shape: f32[64,1], index: 2, kind: input, shape index: {}]
  %s3 = inlined_call_operand.vmem [shape: f32[64,1], index: 3, kind: input, shape index: {}]
  %s4 = inlined_call_operand.vmem [shape: bf16[64,64], index: 4, kind: input, shape index: {}]
  %s5 = inlined_call_operand.vmem [shape: bf16[64,64], index: 5, kind: input, shape index: {}]
  %s6 = inlined_call_operand.vmem [shape: f32[64,1], index: 6, kind: input, shape index: {}]
  %s7 = inlined_call_operand.vmem [shape: f32[64,1], index: 7, kind: input, shape index: {}]
  %s8 = inlined_call_operand.vmem [shape: f32[64,1], index: 8, kind: input, shape index: {}]
  %s9 = inlined_call_operand.vmem [shape: f32[64,1], index: 9, kind: input, shape index: {}]
  %s10 = inlined_call_operand.vmem [shape: f32[64,1], index: 10, kind: input, shape index: {}]
  %s11 = inlined_call_operand.<no memory space> [shape: f32[1,1], index: 11, kind: input, shape index: {}]
  %s12 = inlined_call_operand.vmem [shape: f32[1,128], index: 12, kind: output, shape index: {}]
  %s13 = sld [smem:[#allocation0]]
  $region58: #{arithmetic_model.1} parent=0
    _
  %s15 = ssub.s32 1, %s13
  %s16 = scalar_select 0, %s15, %s13
  %v17 = vstv %s11
  %18 = vst [vmem:[#allocation2] sm:$0x1] %v17
  // Predicated region
  $region2: #{arithmetic_model.1} parent=0 // pred_check
    _
  $region3: #{arithmetic_model.1} parent=0 // pred_check_branch
    %20 = sbr.rel (0) target = $region5
  $region4: #{arithmetic_model.1} parent=0 // pred_region
    _
  $region5: #{arithmetic_model.1} parent=0 // pred_fallthru
    _
  // Predicated region
  $region6: #{arithmetic_model.1} parent=0 // pred_check
    _
  $region7: #{arithmetic_model.1} parent=0 // pred_check_branch
    %22 = sbr.rel (0) target = $region9
  $region8: #{arithmetic_model.1} parent=0 // pred_region
    _
  $region9: #{arithmetic_model.1} parent=0 // pred_fallthru
    _
  // Predicated region
  $region10: #{arithmetic_model.1} parent=0 // pred_check
    _
  $region11: #{arithmetic_model.1} parent=0 // pred_check_branch
    %24 = sbr.rel (0) target = $region13
  $region12: #{arithmetic_model.1} parent=0 // pred_region
    _
  $region13: #{arithmetic_model.1} parent=0 // pred_fallthru
    _
  // Predicated region
  $region14: #{arithmetic_model.1} parent=0 // pred_check
    _
  $region15: #{arithmetic_model.1} parent=0 // pred_check_branch
    %26 = sbr.rel (0) target = $region17
  $region16: #{arithmetic_model.1} parent=0 // pred_region
    _
  $region17: #{arithmetic_model.1} parent=0 // pred_fallthru
    _
  // Predicated region
  $region18: #{arithmetic_model.1} parent=0 // pred_check
    _
  $region19: #{arithmetic_model.1} parent=0 // pred_check_branch
    %28 = sbr.rel (0) target = $region21
  $region20: #{arithmetic_model.1} parent=0 // pred_region
    _
  $region21: #{arithmetic_model.1} parent=0 // pred_fallthru
    _
  // Predicated region
  $region22: #{arithmetic_model.1} parent=0 // pred_check
    _
  $region23: #{arithmetic_model.1} parent=0 // pred_check_branch
    %30 = sbr.rel (0) target = $region25
  $region24: #{arithmetic_model.1} parent=0 // pred_region
    _
  $region25: #{arithmetic_model.1} parent=0 // pred_fallthru
    _
  // Predicated region
  $region26: #{arithmetic_model.1} parent=0 // pred_check
    _
  $region27: #{arithmetic_model.1} parent=0 // pred_check_branch
    %32 = sbr.rel (0) target = $region29
  $region28: #{arithmetic_model.1} parent=0 // pred_region
    _
  $region29: #{arithmetic_model.1} parent=0 // pred_fallthru
    _
  // Predicated region
  $region30: #{arithmetic_model.1} parent=0 // pred_check
    _
  $region31: #{arithmetic_model.1} parent=0 // pred_check_branch
    %34 = sbr.rel (0) target = $region33
  $region32: #{arithmetic_model.1} parent=0 // pred_region
    _
  $region33: #{arithmetic_model.1} parent=0 // pred_fallthru
    _
  // Predicated region
  $region34: #{arithmetic_model.1} parent=0 // pred_check
    _
  $region35: #{arithmetic_model.1} parent=0 // pred_check_branch
    %36 = sbr.rel (0) target = $region37
  $region36: #{arithmetic_model.1} parent=0 // pred_region
    _
  $region37: #{arithmetic_model.1} parent=0 // pred_fallthru
    _
  // Predicated region
  $region38: #{arithmetic_model.1} parent=0 // pred_check
    _
  $region39: #{arithmetic_model.1} parent=0 // pred_check_branch
    %38 = sbr.rel (0) target = $region41
  $region40: #{arithmetic_model.1} parent=0 // pred_region
    _
  $region41: #{arithmetic_model.1} parent=0 // pred_fallthru
    _
  // Predicated region
  $region42: #{arithmetic_model.1} parent=0 // pred_check
    _
  $region43: #{arithmetic_model.1} parent=0 // pred_check_branch
    %40 = sbr.rel (0) target = $region45
  $region44: #{arithmetic_model.1} parent=0 // pred_region
    _
  $region45: #{arithmetic_model.1} parent=0 // pred_fallthru
    _
  // Predicated region
  $region46: #{arithmetic_model.1} parent=0 // pred_check
    _
  $region47: #{arithmetic_model.1} parent=0 // pred_check_branch
    %42 = sbr.rel (0) target = $region49
  $region48: #{arithmetic_model.1} parent=0 // pred_region
    _
  $region49: #{arithmetic_model.1} parent=0 // pred_fallthru
    _
  %v44 = vld [vmem:[%s0] sm:$0xff]
  %v45 = vld [vmem:[%s1] sm:$0xff]
  %v46 = vld [vmem:[%s1 + $0x8] sm:$0xff]
  %v47 = vld [vmem:[%s1 + $0x10] sm:$0xff]
  %v48 = vld [vmem:[%s1 + $0x18] sm:$0xff]
  %v49 = vld [vmem:[%s1 + $0x20] sm:$0xff]
  %v50 = vld [vmem:[%s1 + $0x28] sm:$0xff]
  %v51 = vld [vmem:[%s1 + $0x30] sm:$0xff]
  %v52 = vld [vmem:[%s1 + $0x38] sm:$0xff]
  %54 = vset.pattern.permute.xlu0 0
  %55 = vperm.xlu0 %54, %v45
  %v56 = vpop.permute.xlu0 %55
  %59 = vset.pattern.permute.xlu0 0
  %60 = vperm.xlu0 %59, %v46
  %v61 = vpop.permute.xlu0 %60
  %64 = vset.pattern.permute.xlu0 0
  %65 = vperm.xlu0 %64, %v47
  %v66 = vpop.permute.xlu0 %65
  %69 = vset.pattern.permute.xlu0 0
  %70 = vperm.xlu0 %69, %v48
  %v71 = vpop.permute.xlu0 %70
  %74 = vset.pattern.permute.xlu0 0
  %75 = vperm.xlu0 %74, %v49
  %v76 = vpop.permute.xlu0 %75
  %79 = vset.pattern.permute.xlu0 0
  %80 = vperm.xlu0 %79, %v50
  %v81 = vpop.permute.xlu0 %80
  %84 = vset.pattern.permute.xlu0 0
  %85 = vperm.xlu0 %84, %v51
  %v86 = vpop.permute.xlu0 %85
  %89 = vset.pattern.permute.xlu0 0
  %90 = vperm.xlu0 %89, %v52
  %v91 = vpop.permute.xlu0 %90
  %v93 = vlaneseq
  %v94 = vshrl.u32 %v93, 7
  %v95 = vsub.s32 0, %v94
  %v96 = vrot.slane %v44, %v95
  %v97 = vmul.f32 %v56, %v96
  %v98 = vmul.f32 %v61, %v96
  %v99 = vmul.f32 %v66, %v96
  %v100 = vmul.f32 %v71, %v96
  %v101 = vmul.f32 %v76, %v96
  %v102 = vmul.f32 %v81, %v96
  %v103 = vmul.f32 %v86, %v96
  %v104 = vmul.f32 %v91, %v96
  %v105 = vld [vmem:[%s2] sm:$0xff]
  %v106 = vld [vmem:[%s2 + $0x8] sm:$0xff]
  %v107 = vld [vmem:[%s2 + $0x10] sm:$0xff]
  %v108 = vld [vmem:[%s2 + $0x18] sm:$0xff]
  %v109 = vld [vmem:[%s2 + $0x20] sm:$0xff]
  %v110 = vld [vmem:[%s2 + $0x28] sm:$0xff]
  %v111 = vld [vmem:[%s2 + $0x30] sm:$0xff]
  %v112 = vld [vmem:[%s2 + $0x38] sm:$0xff]
  %114 = vset.pattern.permute.xlu0 0
  %115 = vperm.xlu0 %114, %v105
  %v116 = vpop.permute.xlu0 %115
  %119 = vset.pattern.permute.xlu0 0
  %120 = vperm.xlu0 %119, %v106
  %v121 = vpop.permute.xlu0 %120
  %124 = vset.pattern.permute.xlu0 0
  %125 = vperm.xlu0 %124, %v107
  %v126 = vpop.permute.xlu0 %125
  %129 = vset.pattern.permute.xlu0 0
  %130 = vperm.xlu0 %129, %v108
  %v131 = vpop.permute.xlu0 %130
  %134 = vset.pattern.permute.xlu0 0
  %135 = vperm.xlu0 %134, %v109
  %v136 = vpop.permute.xlu0 %135
  %139 = vset.pattern.permute.xlu0 0
  %140 = vperm.xlu0 %139, %v110
  %v141 = vpop.permute.xlu0 %140
  %144 = vset.pattern.permute.xlu0 0
  %145 = vperm.xlu0 %144, %v111
  %v146 = vpop.permute.xlu0 %145
  %149 = vset.pattern.permute.xlu0 0
  %150 = vperm.xlu0 %149, %v112
  %v151 = vpop.permute.xlu0 %150
  %v153 = vadd.f32 %v97, %v116
  %v154 = vadd.f32 %v98, %v121
  %v155 = vadd.f32 %v99, %v126
  %v156 = vadd.f32 %v100, %v131
  %v157 = vadd.f32 %v101, %v136
  %v158 = vadd.f32 %v102, %v141
  %v159 = vadd.f32 %v103, %v146
  %v160 = vadd.f32 %v104, %v151
  %v161 = vmax.f32 %v153, 0.0
  %v162 = vmax.f32 %v154, 0.0
  %v163 = vmax.f32 %v155, 0.0
  %v164 = vmax.f32 %v156, 0.0
  %v165 = vmax.f32 %v157, 0.0
  %v166 = vmax.f32 %v158, 0.0
  %v167 = vmax.f32 %v159, 0.0
  %v168 = vmax.f32 %v160, 0.0
  %v169 = vlaneseq
  %v170 = vshrl.u32 %v169, 7
  %v171 = vsub.s32 1, %v170
  %v172 = vrot.slane %v44, %v171
  %v173 = vmul.f32 %v56, %v172
  %v174 = vmul.f32 %v61, %v172
  %v175 = vmul.f32 %v66, %v172
  %v176 = vmul.f32 %v71, %v172
  %v177 = vmul.f32 %v76, %v172
  %v178 = vmul.f32 %v81, %v172
  %v179 = vmul.f32 %v86, %v172
  %v180 = vmul.f32 %v91, %v172
  %v181 = vld [vmem:[%s3] sm:$0xff]
  %v182 = vld [vmem:[%s3 + $0x8] sm:$0xff]
  %v183 = vld [vmem:[%s3 + $0x10] sm:$0xff]
  %v184 = vld [vmem:[%s3 + $0x18] sm:$0xff]
  %v185 = vld [vmem:[%s3 + $0x20] sm:$0xff]
  %v186 = vld [vmem:[%s3 + $0x28] sm:$0xff]
  %v187 = vld [vmem:[%s3 + $0x30] sm:$0xff]
  %v188 = vld [vmem:[%s3 + $0x38] sm:$0xff]
  %190 = vset.pattern.permute.xlu0 0
  %191 = vperm.xlu0 %190, %v181
  %v192 = vpop.permute.xlu0 %191
  %195 = vset.pattern.permute.xlu0 0
  %196 = vperm.xlu0 %195, %v182
  %v197 = vpop.permute.xlu0 %196
  %200 = vset.pattern.permute.xlu0 0
  %201 = vperm.xlu0 %200, %v183
  %v202 = vpop.permute.xlu0 %201
  %205 = vset.pattern.permute.xlu0 0
  %206 = vperm.xlu0 %205, %v184
  %v207 = vpop.permute.xlu0 %206
  %210 = vset.pattern.permute.xlu0 0
  %211 = vperm.xlu0 %210, %v185
  %v212 = vpop.permute.xlu0 %211
  %215 = vset.pattern.permute.xlu0 0
  %216 = vperm.xlu0 %215, %v186
  %v217 = vpop.permute.xlu0 %216
  %220 = vset.pattern.permute.xlu0 0
  %221 = vperm.xlu0 %220, %v187
  %v222 = vpop.permute.xlu0 %221
  %225 = vset.pattern.permute.xlu0 0
  %226 = vperm.xlu0 %225, %v188
  %v227 = vpop.permute.xlu0 %226
  %v229 = vadd.f32 %v173, %v192
  %v230 = vadd.f32 %v174, %v197
  %v231 = vadd.f32 %v175, %v202
  %v232 = vadd.f32 %v176, %v207
  %v233 = vadd.f32 %v177, %v212
  %v234 = vadd.f32 %v178, %v217
  %v235 = vadd.f32 %v179, %v222
  %v236 = vadd.f32 %v180, %v227
  %v237 = vmax.f32 %v229, 0.0
  %v238 = vmax.f32 %v230, 0.0
  %v239 = vmax.f32 %v231, 0.0
  %v240 = vmax.f32 %v232, 0.0
  %v241 = vmax.f32 %v233, 0.0
  %v242 = vmax.f32 %v234, 0.0
  %v243 = vmax.f32 %v235, 0.0
  %v244 = vmax.f32 %v236, 0.0
  %v245 = vld [vmem:[%s4] sm:$0xf]
  %v246 = vld [vmem:[%s4 + $0x4] sm:$0xf]
  %v247 = vld [vmem:[%s4 + $0x8] sm:$0xf]
  %v248 = vld [vmem:[%s4 + $0xc] sm:$0xf]
  %v249 = vld [vmem:[%s4 + $0x10] sm:$0xf]
  %v250 = vld [vmem:[%s4 + $0x14] sm:$0xf]
  %v251 = vld [vmem:[%s4 + $0x18] sm:$0xf]
  %v252 = vld [vmem:[%s4 + $0x1c] sm:$0xf]
  %v253 = vpack.c.bf16 %v162, %v161
  %v254 = vpack.c.bf16 %v164, %v163
  %v255 = vpack.c.bf16 %v166, %v165
  %v256 = vpack.c.bf16 %v168, %v167
  %v257 = vld [vmem:[%s5] sm:$0xf]
  %v258 = vld [vmem:[%s5 + $0x4] sm:$0xf]
  %v259 = vld [vmem:[%s5 + $0x8] sm:$0xf]
  %v260 = vld [vmem:[%s5 + $0xc] sm:$0xf]
  %v261 = vld [vmem:[%s5 + $0x10] sm:$0xf]
  %v262 = vld [vmem:[%s5 + $0x14] sm:$0xf]
  %v263 = vld [vmem:[%s5 + $0x18] sm:$0xf]
  %v264 = vld [vmem:[%s5 + $0x1c] sm:$0xf]
  %v265 = vpack.c.bf16 %v238, %v237
  %v266 = vpack.c.bf16 %v240, %v239
  %v267 = vpack.c.bf16 %v242, %v241
  %v268 = vpack.c.bf16 %v244, %v243
  %v277 = vunpack.c.l.b16 %v257
  %v278 = vunpack.c.l.b16 %v258
  %v279 = vunpack.c.l.b16 %v259
  %v280 = vunpack.c.l.b16 %v260
  %v281 = vunpack.c.l.b16 %v261
  %v282 = vunpack.c.l.b16 %v262
  %v283 = vunpack.c.l.b16 %v263
  %v284 = vunpack.c.l.b16 %v264
  %v285 = vpack.c.b16 %v278, %v277
  %v286 = vpack.c.b16 %v280, %v279
  %v287 = vpack.c.b16 %v282, %v281
  %v288 = vpack.c.b16 %v284, %v283
  %vm289 = vcmask 523264
  %v291 = vsel %vm289, %v285, 0
  %v294 = vsel %vm289, %v286, 0
  %v297 = vsel %vm289, %v287, 0
  %v300 = vsel %vm289, %v288, 0
  %302 = vmatprep.subr.bf16.mxu0 0
  %303 = vmatpush1.bf16.msra.mxu0 %v265
  %304 = vmatprep.subr.bf16.mxu0 0
  %305 = vmatpush1.bf16.msra.mxu0 %v266
  %306 = vmatprep.subr.bf16.mxu0 0
  %307 = vmatpush1.bf16.msra.mxu0 %v267
  %308 = vmatprep.subr.bf16.mxu0 0
  %309 = vmatpush1.bf16.msra.mxu0 %v268
  %310 = vmatprep.subr.bf16.mxu0 0
  %311 = vmatpush1.bf16.msra.mxu0 0
  %312 = vmatprep.subr.bf16.mxu0 0
  %313 = vmatpush1.bf16.msra.mxu0 0
  %314 = vmatprep.subr.bf16.mxu0 0
  %315 = vmatpush1.bf16.msra.mxu0 0
  %316 = vmatprep.subr.bf16.mxu0 0
  %317 = vmatpush1.bf16.msra.mxu0 0
  %318 = vmatprep.subr.bf16.mxu0 0
  %319 = vmatpush1.bf16.msra.mxu0 0
  %320 = vmatprep.subr.bf16.mxu0 0
  %321 = vmatpush1.bf16.msra.mxu0 0
  %322 = vmatprep.subr.bf16.mxu0 0
  %323 = vmatpush1.bf16.msra.mxu0 0
  %324 = vmatprep.subr.bf16.mxu0 0
  %325 = vmatpush1.bf16.msra.mxu0 0
  %326 = vmatprep.subr.bf16.mxu0 0
  %327 = vmatpush1.bf16.msra.mxu0 0
  %328 = vmatprep.subr.bf16.mxu0 0
  %329 = vmatpush1.bf16.msra.mxu0 0
  %330 = vmatprep.subr.bf16.mxu0 0
  %331 = vmatpush1.bf16.msra.mxu0 0
  %332 = vmatprep.subr.bf16.mxu0 0
  %333 = vmatpush1.bf16.msra.mxu0 0
  %334 = vmatprep.mubr.bf16.mxu0 0
  %335 = vmatmul.mubr.bf16.gmra.mrb[0].mxu0 %v291
  %v336 = vpop.f32.mrb[0].mxu0
  %v337 = vadd.f32 0.0, %v336
  %v338 = vpop.f32.mrb[0].mxu0
  %v339 = vpop.f32.mrb[0].mxu0
  %v340 = vadd.f32 0.0, %v339
  %v341 = vpop.f32.mrb[0].mxu0
  %342 = vmatprep.mubr.bf16.mxu0 0
  %343 = vmatmul.mubr.bf16.gmra.mrb[0].mxu0 %v294
  %v344 = vpop.f32.mrb[0].mxu0
  %v345 = vadd.f32 0.0, %v344
  %v346 = vpop.f32.mrb[0].mxu0
  %v347 = vpop.f32.mrb[0].mxu0
  %v348 = vadd.f32 0.0, %v347
  %v349 = vpop.f32.mrb[0].mxu0
  %350 = vmatprep.mubr.bf16.mxu0 0
  %351 = vmatmul.mubr.bf16.gmra.mrb[0].mxu0 %v297
  %v352 = vpop.f32.mrb[0].mxu0
  %v353 = vadd.f32 0.0, %v352
  %v354 = vpop.f32.mrb[0].mxu0
  %v355 = vpop.f32.mrb[0].mxu0
  %v356 = vadd.f32 0.0, %v355
  %v357 = vpop.f32.mrb[0].mxu0
  %358 = vmatprep.mubr.bf16.mxu0 0
  %359 = vmatmul.mubr.bf16.gmra.mrb[0].mxu0 %v300
  %v360 = vpop.f32.mrb[0].mxu0
  %v361 = vadd.f32 0.0, %v360
  %v362 = vpop.f32.mrb[0].mxu0
  %v363 = vpop.f32.mrb[0].mxu0
  %v364 = vadd.f32 0.0, %v363
  %v365 = vpop.f32.mrb[0].mxu0
  %366 = vdwg.mxu0
  %v375 = vunpack.c.l.b16 %v245
  %v376 = vunpack.c.l.b16 %v246
  %v377 = vunpack.c.l.b16 %v247
  %v378 = vunpack.c.l.b16 %v248
  %v379 = vunpack.c.l.b16 %v249
  %v380 = vunpack.c.l.b16 %v250
  %v381 = vunpack.c.l.b16 %v251
  %v382 = vunpack.c.l.b16 %v252
  %v383 = vpack.c.b16 %v376, %v375
  %v384 = vpack.c.b16 %v378, %v377
  %v385 = vpack.c.b16 %v380, %v379
  %v386 = vpack.c.b16 %v382, %v381
  %v388 = vsel %vm289, %v383, 0
  %v391 = vsel %vm289, %v384, 0
  %v394 = vsel %vm289, %v385, 0
  %v397 = vsel %vm289, %v386, 0
  %399 = vmatprep.subr.bf16.mxu0 0
  %400 = vmatpush1.bf16.msra.mxu0 %v253
  %401 = vmatprep.subr.bf16.mxu0 0
  %402 = vmatpush1.bf16.msra.mxu0 %v254
  %403 = vmatprep.subr.bf16.mxu0 0
  %404 = vmatpush1.bf16.msra.mxu0 %v255
  %405 = vmatprep.subr.bf16.mxu0 0
  %406 = vmatpush1.bf16.msra.mxu0 %v256
  %407 = vmatprep.subr.bf16.mxu0 0
  %408 = vmatpush1.bf16.msra.mxu0 0
  %409 = vmatprep.subr.bf16.mxu0 0
  %410 = vmatpush1.bf16.msra.mxu0 0
  %411 = vmatprep.subr.bf16.mxu0 0
  %412 = vmatpush1.bf16.msra.mxu0 0
  %413 = vmatprep.subr.bf16.mxu0 0
  %414 = vmatpush1.bf16.msra.mxu0 0
  %415 = vmatprep.subr.bf16.mxu0 0
  %416 = vmatpush1.bf16.msra.mxu0 0
  %417 = vmatprep.subr.bf16.mxu0 0
  %418 = vmatpush1.bf16.msra.mxu0 0
  %419 = vmatprep.subr.bf16.mxu0 0
  %420 = vmatpush1.bf16.msra.mxu0 0
  %421 = vmatprep.subr.bf16.mxu0 0
  %422 = vmatpush1.bf16.msra.mxu0 0
  %423 = vmatprep.subr.bf16.mxu0 0
  %424 = vmatpush1.bf16.msra.mxu0 0
  %425 = vmatprep.subr.bf16.mxu0 0
  %426 = vmatpush1.bf16.msra.mxu0 0
  %427 = vmatprep.subr.bf16.mxu0 0
  %428 = vmatpush1.bf16.msra.mxu0 0
  %429 = vmatprep.subr.bf16.mxu0 0
  %430 = vmatpush1.bf16.msra.mxu0 0
  %431 = vmatprep.mubr.bf16.mxu0 0
  %432 = vmatmul.mubr.bf16.gmra.mrb[0].mxu0 %v388
  %v433 = vpop.f32.mrb[0].mxu0
  %v434 = vadd.f32 %v337, %v433
  %v435 = vpop.f32.mrb[0].mxu0
  %v436 = vpop.f32.mrb[0].mxu0
  %v437 = vadd.f32 %v340, %v436
  %v438 = vpop.f32.mrb[0].mxu0
  %439 = vmatprep.mubr.bf16.mxu0 0
  %440 = vmatmul.mubr.bf16.gmra.mrb[0].mxu0 %v391
  %v441 = vpop.f32.mrb[0].mxu0
  %v442 = vadd.f32 %v345, %v441
  %v443 = vpop.f32.mrb[0].mxu0
  %v444 = vpop.f32.mrb[0].mxu0
  %v445 = vadd.f32 %v348, %v444
  %v446 = vpop.f32.mrb[0].mxu0
  %447 = vmatprep.mubr.bf16.mxu0 0
  %448 = vmatmul.mubr.bf16.gmra.mrb[0].mxu0 %v394
  %v449 = vpop.f32.mrb[0].mxu0
  %v450 = vadd.f32 %v353, %v449
  %v451 = vpop.f32.mrb[0].mxu0
  %v452 = vpop.f32.mrb[0].mxu0
  %v453 = vadd.f32 %v356, %v452
  %v454 = vpop.f32.mrb[0].mxu0
  %455 = vmatprep.mubr.bf16.mxu0 0
  %456 = vmatmul.mubr.bf16.gmra.mrb[0].mxu0 %v397
  %v457 = vpop.f32.mrb[0].mxu0
  %v458 = vadd.f32 %v361, %v457
  %v459 = vpop.f32.mrb[0].mxu0
  %v460 = vpop.f32.mrb[0].mxu0
  %v461 = vadd.f32 %v364, %v460
  %v462 = vpop.f32.mrb[0].mxu0
  %463 = vdwg.mxu0
  %v464 = vld [vmem:[%s6] sm:$0xff]
  %v465 = vld [vmem:[%s6 + $0x8] sm:$0xff]
  %v466 = vld [vmem:[%s6 + $0x10] sm:$0xff]
  %v467 = vld [vmem:[%s6 + $0x18] sm:$0xff]
  %v468 = vld [vmem:[%s6 + $0x20] sm:$0xff]
  %v469 = vld [vmem:[%s6 + $0x28] sm:$0xff]
  %v470 = vld [vmem:[%s6 + $0x30] sm:$0xff]
  %v471 = vld [vmem:[%s6 + $0x38] sm:$0xff]
  %473 = vset.pattern.permute.xlu0 0
  %474 = vperm.xlu0 %473, %v464
  %v475 = vpop.permute.xlu0 %474
  %478 = vset.pattern.permute.xlu0 0
  %479 = vperm.xlu0 %478, %v465
  %v480 = vpop.permute.xlu0 %479
  %483 = vset.pattern.permute.xlu0 0
  %484 = vperm.xlu0 %483, %v466
  %v485 = vpop.permute.xlu0 %484
  %488 = vset.pattern.permute.xlu0 0
  %489 = vperm.xlu0 %488, %v467
  %v490 = vpop.permute.xlu0 %489
  %493 = vset.pattern.permute.xlu0 0
  %494 = vperm.xlu0 %493, %v468
  %v495 = vpop.permute.xlu0 %494
  %498 = vset.pattern.permute.xlu0 0
  %499 = vperm.xlu0 %498, %v469
  %v500 = vpop.permute.xlu0 %499
  %503 = vset.pattern.permute.xlu0 0
  %504 = vperm.xlu0 %503, %v470
  %v505 = vpop.permute.xlu0 %504
  %508 = vset.pattern.permute.xlu0 0
  %509 = vperm.xlu0 %508, %v471
  %v510 = vpop.permute.xlu0 %509
  %v512 = vlaneseq
  %v513 = vshrl.u32 %v512, 7
  %v514 = vsub.s32 2, %v513
  %v515 = vrot.slane %v44, %v514
  %v516 = vmul.f32 %v475, %v515
  %v517 = vmul.f32 %v480, %v515
  %v518 = vmul.f32 %v485, %v515
  %v519 = vmul.f32 %v490, %v515
  %v520 = vmul.f32 %v495, %v515
  %v521 = vmul.f32 %v500, %v515
  %v522 = vmul.f32 %v505, %v515
  %v523 = vmul.f32 %v510, %v515
  %v524 = vld [vmem:[%s7] sm:$0xff]
  %v525 = vld [vmem:[%s7 + $0x8] sm:$0xff]
  %v526 = vld [vmem:[%s7 + $0x10] sm:$0xff]
  %v527 = vld [vmem:[%s7 + $0x18] sm:$0xff]
  %v528 = vld [vmem:[%s7 + $0x20] sm:$0xff]
  %v529 = vld [vmem:[%s7 + $0x28] sm:$0xff]
  %v530 = vld [vmem:[%s7 + $0x30] sm:$0xff]
  %v531 = vld [vmem:[%s7 + $0x38] sm:$0xff]
  %533 = vset.pattern.permute.xlu0 0
  %534 = vperm.xlu0 %533, %v524
  %v535 = vpop.permute.xlu0 %534
  %538 = vset.pattern.permute.xlu0 0
  %539 = vperm.xlu0 %538, %v525
  %v540 = vpop.permute.xlu0 %539
  %543 = vset.pattern.permute.xlu0 0
  %544 = vperm.xlu0 %543, %v526
  %v545 = vpop.permute.xlu0 %544
  %548 = vset.pattern.permute.xlu0 0
  %549 = vperm.xlu0 %548, %v527
  %v550 = vpop.permute.xlu0 %549
  %553 = vset.pattern.permute.xlu0 0
  %554 = vperm.xlu0 %553, %v528
  %v555 = vpop.permute.xlu0 %554
  %558 = vset.pattern.permute.xlu0 0
  %559 = vperm.xlu0 %558, %v529
  %v560 = vpop.permute.xlu0 %559
  %563 = vset.pattern.permute.xlu0 0
  %564 = vperm.xlu0 %563, %v530
  %v565 = vpop.permute.xlu0 %564
  %568 = vset.pattern.permute.xlu0 0
  %569 = vperm.xlu0 %568, %v531
  %v570 = vpop.permute.xlu0 %569
  %v572 = vlaneseq
  %v573 = vshrl.u32 %v572, 7
  %v574 = vsub.s32 3, %v573
  %v575 = vrot.slane %v44, %v574
  %v576 = vmul.f32 %v535, %v575
  %v577 = vmul.f32 %v540, %v575
  %v578 = vmul.f32 %v545, %v575
  %v579 = vmul.f32 %v550, %v575
  %v580 = vmul.f32 %v555, %v575
  %v581 = vmul.f32 %v560, %v575
  %v582 = vmul.f32 %v565, %v575
  %v583 = vmul.f32 %v570, %v575
  %v584 = vadd.f32 %v516, %v576
  %v585 = vadd.f32 %v517, %v577
  %v586 = vadd.f32 %v518, %v578
  %v587 = vadd.f32 %v519, %v579
  %v588 = vadd.f32 %v520, %v580
  %v589 = vadd.f32 %v521, %v581
  %v590 = vadd.f32 %v522, %v582
  %v591 = vadd.f32 %v523, %v583
  %v592 = vld [vmem:[%s8] sm:$0xff]
  %v593 = vld [vmem:[%s8 + $0x8] sm:$0xff]
  %v594 = vld [vmem:[%s8 + $0x10] sm:$0xff]
  %v595 = vld [vmem:[%s8 + $0x18] sm:$0xff]
  %v596 = vld [vmem:[%s8 + $0x20] sm:$0xff]
  %v597 = vld [vmem:[%s8 + $0x28] sm:$0xff]
  %v598 = vld [vmem:[%s8 + $0x30] sm:$0xff]
  %v599 = vld [vmem:[%s8 + $0x38] sm:$0xff]
  %601 = vset.pattern.permute.xlu0 0
  %602 = vperm.xlu0 %601, %v592
  %v603 = vpop.permute.xlu0 %602
  %606 = vset.pattern.permute.xlu0 0
  %607 = vperm.xlu0 %606, %v593
  %v608 = vpop.permute.xlu0 %607
  %611 = vset.pattern.permute.xlu0 0
  %612 = vperm.xlu0 %611, %v594
  %v613 = vpop.permute.xlu0 %612
  %616 = vset.pattern.permute.xlu0 0
  %617 = vperm.xlu0 %616, %v595
  %v618 = vpop.permute.xlu0 %617
  %621 = vset.pattern.permute.xlu0 0
  %622 = vperm.xlu0 %621, %v596
  %v623 = vpop.permute.xlu0 %622
  %626 = vset.pattern.permute.xlu0 0
  %627 = vperm.xlu0 %626, %v597
  %v628 = vpop.permute.xlu0 %627
  %631 = vset.pattern.permute.xlu0 0
  %632 = vperm.xlu0 %631, %v598
  %v633 = vpop.permute.xlu0 %632
  %636 = vset.pattern.permute.xlu0 0
  %637 = vperm.xlu0 %636, %v599
  %v638 = vpop.permute.xlu0 %637
  %v640 = vlaneseq
  %v641 = vshrl.u32 %v640, 7
  %v642 = vsub.s32 4, %v641
  %v643 = vrot.slane %v44, %v642
  %v644 = vmul.f32 %v603, %v643
  %v645 = vmul.f32 %v608, %v643
  %v646 = vmul.f32 %v613, %v643
  %v647 = vmul.f32 %v618, %v643
  %v648 = vmul.f32 %v623, %v643
  %v649 = vmul.f32 %v628, %v643
  %v650 = vmul.f32 %v633, %v643
  %v651 = vmul.f32 %v638, %v643
  %v652 = vadd.f32 %v584, %v644
  %v653 = vadd.f32 %v585, %v645
  %v654 = vadd.f32 %v586, %v646
  %v655 = vadd.f32 %v587, %v647
  %v656 = vadd.f32 %v588, %v648
  %v657 = vadd.f32 %v589, %v649
  %v658 = vadd.f32 %v590, %v650
  %v659 = vadd.f32 %v591, %v651
  %v660 = vadd.f32 %v434, %v652
  %v661 = vadd.f32 %v437, %v653
  %v662 = vadd.f32 %v442, %v654
  %v663 = vadd.f32 %v445, %v655
  %v664 = vadd.f32 %v450, %v656
  %v665 = vadd.f32 %v453, %v657
  %v666 = vadd.f32 %v458, %v658
  %v667 = vadd.f32 %v461, %v659
  %v668 = vld [vmem:[%s9] sm:$0xff]
  %v669 = vld [vmem:[%s9 + $0x8] sm:$0xff]
  %v670 = vld [vmem:[%s9 + $0x10] sm:$0xff]
  %v671 = vld [vmem:[%s9 + $0x18] sm:$0xff]
  %v672 = vld [vmem:[%s9 + $0x20] sm:$0xff]
  %v673 = vld [vmem:[%s9 + $0x28] sm:$0xff]
  %v674 = vld [vmem:[%s9 + $0x30] sm:$0xff]
  %v675 = vld [vmem:[%s9 + $0x38] sm:$0xff]
  %677 = vset.pattern.permute.xlu0 0
  %678 = vperm.xlu0 %677, %v668
  %v679 = vpop.permute.xlu0 %678
  %682 = vset.pattern.permute.xlu0 0
  %683 = vperm.xlu0 %682, %v669
  %v684 = vpop.permute.xlu0 %683
  %687 = vset.pattern.permute.xlu0 0
  %688 = vperm.xlu0 %687, %v670
  %v689 = vpop.permute.xlu0 %688
  %692 = vset.pattern.permute.xlu0 0
  %693 = vperm.xlu0 %692, %v671
  %v694 = vpop.permute.xlu0 %693
  %697 = vset.pattern.permute.xlu0 0
  %698 = vperm.xlu0 %697, %v672
  %v699 = vpop.permute.xlu0 %698
  %702 = vset.pattern.permute.xlu0 0
  %703 = vperm.xlu0 %702, %v673
  %v704 = vpop.permute.xlu0 %703
  %707 = vset.pattern.permute.xlu0 0
  %708 = vperm.xlu0 %707, %v674
  %v709 = vpop.permute.xlu0 %708
  %712 = vset.pattern.permute.xlu0 0
  %713 = vperm.xlu0 %712, %v675
  %v714 = vpop.permute.xlu0 %713
  %v716 = vadd.f32 %v660, %v679
  %v717 = vadd.f32 %v661, %v684
  %v718 = vadd.f32 %v662, %v689
  %v719 = vadd.f32 %v663, %v694
  %v720 = vadd.f32 %v664, %v699
  %v721 = vadd.f32 %v665, %v704
  %v722 = vadd.f32 %v666, %v709
  %v723 = vadd.f32 %v667, %v714
  %v724 = vmax.f32 %v716, 0.0
  %v725 = vmax.f32 %v717, 0.0
  %v726 = vmax.f32 %v718, 0.0
  %v727 = vmax.f32 %v719, 0.0
  %v728 = vmax.f32 %v720, 0.0
  %v729 = vmax.f32 %v721, 0.0
  %v730 = vmax.f32 %v722, 0.0
  %v731 = vmax.f32 %v723, 0.0
  %v732 = vld [vmem:[%s10] sm:$0xff]
  %v733 = vld [vmem:[%s10 + $0x8] sm:$0xff]
  %v734 = vld [vmem:[%s10 + $0x10] sm:$0xff]
  %v735 = vld [vmem:[%s10 + $0x18] sm:$0xff]
  %v736 = vld [vmem:[%s10 + $0x20] sm:$0xff]
  %v737 = vld [vmem:[%s10 + $0x28] sm:$0xff]
  %v738 = vld [vmem:[%s10 + $0x30] sm:$0xff]
  %v739 = vld [vmem:[%s10 + $0x38] sm:$0xff]
  %741 = vset.pattern.permute.xlu0 0
  %742 = vperm.xlu0 %741, %v732
  %v743 = vpop.permute.xlu0 %742
  %746 = vset.pattern.permute.xlu0 0
  %747 = vperm.xlu0 %746, %v733
  %v748 = vpop.permute.xlu0 %747
  %751 = vset.pattern.permute.xlu0 0
  %752 = vperm.xlu0 %751, %v734
  %v753 = vpop.permute.xlu0 %752
  %756 = vset.pattern.permute.xlu0 0
  %757 = vperm.xlu0 %756, %v735
  %v758 = vpop.permute.xlu0 %757
  %761 = vset.pattern.permute.xlu0 0
  %762 = vperm.xlu0 %761, %v736
  %v763 = vpop.permute.xlu0 %762
  %766 = vset.pattern.permute.xlu0 0
  %767 = vperm.xlu0 %766, %v737
  %v768 = vpop.permute.xlu0 %767
  %771 = vset.pattern.permute.xlu0 0
  %772 = vperm.xlu0 %771, %v738
  %v773 = vpop.permute.xlu0 %772
  %776 = vset.pattern.permute.xlu0 0
  %777 = vperm.xlu0 %776, %v739
  %v778 = vpop.permute.xlu0 %777
  %v780 = vmul.f32 %v724, %v743
  %v781 = vmul.f32 %v725, %v748
  %v782 = vmul.f32 %v726, %v753
  %v783 = vmul.f32 %v727, %v758
  %v784 = vmul.f32 %v728, %v763
  %v785 = vmul.f32 %v729, %v768
  %v786 = vmul.f32 %v730, %v773
  %v787 = vmul.f32 %v731, %v778
  %v788 = vadd.f32 %v780, %v781
  %v789 = vadd.f32 %v788, %v782
  %v790 = vadd.f32 %v789, %v783
  %v791 = vadd.f32 %v790, %v784
  %v792 = vadd.f32 %v791, %v785
  %v793 = vadd.f32 %v792, %v786
  %v794 = vadd.f32 %v793, %v787
  %v795 = vrot.slane %v794, 4
  %v796 = vadd.f32 %v794, %v795
  %v797 = vrot.slane %v796, 2
  %v798 = vadd.f32 %v796, %v797
  %v799 = vrot.slane %v798, 1
  %v800 = vadd.f32 %v798, %v799
  %v801 = vld [vmem:[#allocation2] sm:$0x1]
  %803 = vset.pattern.permute.xlu0 0
  %804 = vperm.xlu0 %803, %v801
  %v805 = vpop.permute.xlu0 %804
  %v807 = vlaneseq
  %v808 = vshrl.u32 %v807, 7
  %v809 = vsub.s32 0, %v808
  %v810 = vrot.slane %v805, %v809
  %v811 = vadd.f32 %v800, %v810
  %812 = vst [vmem:[%s12] sm:$0x1] %v811
  // Predicated region
  $region50: #{arithmetic_model.1} parent=0 // pred_check
    _
  $region51: #{arithmetic_model.1} parent=0 // pred_check_branch
    %814 = sbr.rel (0) target = $region53
  $region52: #{arithmetic_model.1} parent=0 // pred_region
    _
  $region53: #{arithmetic_model.1} parent=0 // pred_fallthru
    _
  // Predicated region
  $region54: #{arithmetic_model.1} parent=0 // pred_check
    _
  $region55: #{arithmetic_model.1} parent=0 // pred_check_branch
    %816 = sbr.rel (0) target = $region57
  $region56: #{arithmetic_model.1} parent=0 // pred_region
    _
  $region57: #{arithmetic_model.1} parent=0 // pred_fallthru
    _

</llo_original>
